<compile_context>
chip_gen: v7x
topology: tpu7x:2x2x1
jax: 0.10.0
libtpu: 0.0.40
codegen_flags: <defaults>
</compile_context>

<pallas_src>
import math
from functools import partial

import jax
import jax.numpy as jnp
from jax import lax
from jax.experimental import pallas as pl
from jax.experimental.pallas import tpu as pltpu


def _round_up(x, m):
    return ((x + m - 1) // m) * m


# ----------------------------------------------------------------------------- K/V projection
def kv_proj_kernel(x_kv_ref, wk_ref, bk_ref, wv_ref, bv_ref, k_ref, v_ref):
    # x_kv_ref: (TKV, D); wk/wv_ref: (D, D) pre-transposed; bk/bv_ref: (1, D)
    x = x_kv_ref[...]
    k_ref[...] = (jnp.dot(x, wk_ref[...], preferred_element_type=jnp.float32)
                  + bk_ref[...]).astype(k_ref.dtype)
    v_ref[...] = (jnp.dot(x, wv_ref[...], preferred_element_type=jnp.float32)
                  + bv_ref[...]).astype(v_ref.dtype)


# ----------------------------------------------------------------------------- attention core
def mha_kernel(x_q_ref, k_ref, v_ref, wq_ref, bq_ref, wo_ref, bo_ref,
               bq_ids_ref, bkv_ids_ref, out_ref, attn_ref, ctx_ref,
               *, num_heads, d_k):
    # x_q_ref: (TM, D)   k_ref/v_ref: (Nkv, D)   wq/wo_ref: (D, D)   bq/bo_ref: (1, D)
    # bq_ids_ref: (TM, 1) int32   bkv_ids_ref: (1, Nkv) int32
    # out_ref: (TM, D)   attn_ref: (H, TM, Nkv)   ctx_ref: (TM, D) f32 scratch

    # Full-width Q projection for this q tile (1/sqrt(d_k) already folded into Wq/bq).
    q = (jnp.dot(x_q_ref[...], wq_ref[...], preferred_element_type=jnp.float32)
         + bq_ref[...])

    k = k_ref[...]
    v = v_ref[...]
    qc = q.astype(k.dtype)

    # Segment mask built in-kernel (no O(Nq*Nkv) mask array streamed from HBM).
    mask = bq_ids_ref[...] == bkv_ids_ref[...]          # (TM, Nkv) bool

    for h in range(num_heads):                          # small static head count -> unrolled
        lo = h * d_k
        q_h = qc[:, lo:lo + d_k]                        # (TM, dk)
        k_h = k[:, lo:lo + d_k]                         # (Nkv, dk)
        v_h = v[:, lo:lo + d_k]                         # (Nkv, dk)

        # scores: contract the dk axis of both operands (no explicit transpose).
        s = lax.dot_general(q_h, k_h, (((1,), (1,)), ((), ())),
                            preferred_element_type=jnp.float32)   # (TM, Nkv)
        # Finite fill (not -inf): fully-masked / padded rows stay NaN-free.
        s = jnp.where(mask, s, jnp.float32(-1e30))

        m = jnp.max(s, axis=-1, keepdims=True)
        p = jnp.exp(s - m)
        l = jnp.sum(p, axis=-1, keepdims=True)
        # EUP reciprocal + VPU multiply instead of a (TM*Nkv) divide on the VALU slot.
        attn = p * pl.reciprocal(l, approx=False)

        attn_ref[h] = attn.astype(attn_ref.dtype)
        ctx_ref[:, lo:lo + d_k] = jnp.dot(attn.astype(v_h.dtype), v_h,
                                          preferred_element_type=jnp.float32)

    # Deferred output projection: one (TM, D) x (D, D) matmul with full Wo resident.
    out_ref[...] = (jnp.dot(ctx_ref[...].astype(wo_ref.dtype), wo_ref[...],
                            preferred_element_type=jnp.float32)
                    + bo_ref[...]).astype(out_ref.dtype)


# ----------------------------------------------------------------------------- wrapper
def multi_head_attention(x_q, x_kv, batch_q, batch_kv,
                         wq, bq, wk, bk, wv, bv, wo, bo, num_heads,
                         *, block_q=None, block_kv=None,
                         compute_dtype=None, attn_dtype=jnp.float32):
    """x_q: (Nq, D); x_kv: (Nkv, D); batch_*: int segment ids; w*: (D, D); b*: (D,)."""
    n_q, d_model = x_q.shape
    n_kv = x_kv.shape[0]
    assert d_model % num_heads == 0, "d_model must divide num_heads"
    d_k = d_model // num_heads

    # Operand dtype for the MXU; set to jnp.bfloat16 for ~2x MXU throughput / half the
    # weight+activation DMA bytes (softmax and accumulation stay f32 either way).
    compute_dtype = compute_dtype or x_q.dtype

    scale = 1.0 / math.sqrt(d_k)

    # Pre-transposed full-width weights; scale folded into Wq/bq (constant-folds under jit).
    wq_t = (wq.T * scale).astype(compute_dtype)         # (D, D)
    wk_t = wk.T.astype(compute_dtype)                   # (D, D)
    wv_t = wv.T.astype(compute_dtype)                   # (D, D)
    wo_t = wo.T.astype(compute_dtype)                   # (D, D)
    bq_2d = (bq * scale).reshape(1, d_model).astype(jnp.float32)
    bk_2d = bk.reshape(1, d_model).astype(jnp.float32)
    bv_2d = bv.reshape(1, d_model).astype(jnp.float32)
    bo_2d = bo.reshape(1, d_model).astype(jnp.float32)

    x_q_c = x_q.astype(compute_dtype)
    x_kv_c = x_kv.astype(compute_dtype)

    # Segment ids as narrow int32 vectors (mask is built in-kernel).
    bq_ids = batch_q.reshape(n_q, 1).astype(jnp.int32)
    bkv_ids = batch_kv.reshape(1, n_kv).astype(jnp.int32)

    # ---- tile sizes -------------------------------------------------------------------
    if block_q is None:
        if n_q <= 8:
            block_q = n_q                                # single small tile
        else:
            # >=2 q tiles so both v7x TensorCores get work; cap for VMEM.
            block_q = min(512, _round_up(pl.cdiv(n_q, 2), 8))
    n_q_tiles = pl.cdiv(n_q, block_q)

    if block_kv is None:
        block_kv = n_kv if n_kv <= 512 else 512
    n_kv_tiles = pl.cdiv(n_kv, block_kv)

    compiler_params = pltpu.CompilerParams(
        dimension_semantics=("parallel",),
        vmem_limit_bytes=64 * 1024 * 1024,
    )

    # ---- K/V projection kernel (hoisted: runs once, full D x D matmuls) ----------------
    k_proj, v_proj = pl.pallas_call(
        kv_proj_kernel,
        out_shape=(jax.ShapeDtypeStruct((n_kv, d_model), compute_dtype),
                   jax.ShapeDtypeStruct((n_kv, d_model), compute_dtype)),
        grid_spec=pltpu.PrefetchScalarGridSpec(
            num_scalar_prefetch=0,
            grid=(n_kv_tiles,),
            in_specs=[
                pl.BlockSpec((block_kv, d_model), lambda i: (i, 0)),     # x_kv tile
                pl.BlockSpec((d_model, d_model), lambda i: (0, 0)),      # Wk^T (resident)
                pl.BlockSpec((1, d_model), lambda i: (0, 0)),            # bk
                pl.BlockSpec((d_model, d_model), lambda i: (0, 0)),      # Wv^T (resident)
                pl.BlockSpec((1, d_model), lambda i: (0, 0)),            # bv
            ],
            out_specs=[
                pl.BlockSpec((block_kv, d_model), lambda i: (i, 0)),     # K
                pl.BlockSpec((block_kv, d_model), lambda i: (i, 0)),     # V
            ],
        ),
        compiler_params=compiler_params,
        cost_estimate=pl.CostEstimate(
            flops=4 * n_kv * d_model * d_model,
            transcendentals=0,
            bytes_accessed=4 * (3 * n_kv * d_model + 2 * d_model * d_model),
        ),
    )(x_kv_c, wk_t, bk_2d, wv_t, bv_2d)

    # ---- attention + output projection kernel ------------------------------------------
    flops = (2 * n_q * d_model * d_model              # Q projection
             + 4 * n_q * n_kv * d_model               # scores + attn @ V (all heads)
             + 2 * n_q * d_model * d_model)           # output projection
    bytes_accessed = (4 * (2 * n_q * d_model + 2 * n_kv * d_model
                           + 2 * d_model * d_model + 2 * d_model + n_q + n_kv)
                      + num_heads * n_q * n_kv * jnp.dtype(attn_dtype).itemsize)

    out, attn = pl.pallas_call(
        partial(mha_kernel, num_heads=num_heads, d_k=d_k),
        out_shape=(
            jax.ShapeDtypeStruct((n_q, d_model), x_q.dtype),
            jax.ShapeDtypeStruct((num_heads, n_q, n_kv), attn_dtype),
        ),
        grid_spec=pltpu.PrefetchScalarGridSpec(
            num_scalar_prefetch=0,
            grid=(n_q_tiles,),
            in_specs=[
                pl.BlockSpec((block_q, d_model), lambda qi: (qi, 0)),    # x_q tile
                pl.BlockSpec((n_kv, d_model), lambda qi: (0, 0)),        # K (resident)
                pl.BlockSpec((n_kv, d_model), lambda qi: (0, 0)),        # V (resident)
                pl.BlockSpec((d_model, d_model), lambda qi: (0, 0)),     # Wq^T * scale
                pl.BlockSpec((1, d_model), lambda qi: (0, 0)),           # bq * scale
                pl.BlockSpec((d_model, d_model), lambda qi: (0, 0)),     # Wo^T (resident)
                pl.BlockSpec((1, d_model), lambda qi: (0, 0)),           # bo (resident)
                pl.BlockSpec((block_q, 1), lambda qi: (qi, 0)),          # batch_q ids tile
                pl.BlockSpec((1, n_kv), lambda qi: (0, 0)),              # batch_kv ids
            ],
            out_specs=[
                pl.BlockSpec((block_q, d_model), lambda qi: (qi, 0)),            # out
                pl.BlockSpec((num_heads, block_q, n_kv), lambda qi: (0, qi, 0)),  # attn
            ],
            scratch_shapes=[pltpu.VMEM((block_q, d_model), jnp.float32)],  # head contexts
        ),
        compiler_params=compiler_params,
        cost_estimate=pl.CostEstimate(
            flops=flops,
            transcendentals=num_heads * n_q * (n_kv + 1),
            bytes_accessed=bytes_accessed,
        ),
    )(x_q_c, k_proj, v_proj, wq_t, bq_2d, wo_t, bo_2d, bq_ids, bkv_ids)

    # TODO(synk): attn_drop / proj_drop are nn.Dropout(p=0.0) -> identity at inference; omitted.
    # PyTorch returns attn with a leading batch axis of size 1.
    return out, attn[None]


# ----------------------------------------------------------------------------- reference
def reference(x_q, x_kv, batch_q, batch_kv, wq, bq, wk, bk, wv, bv, wo, bo, num_heads):
    n_q, d_model = x_q.shape
    n_kv = x_kv.shape[0]
    d_k = d_model // num_heads
    q = (x_q @ wq.T + bq).reshape(n_q, num_heads, d_k).transpose(1, 0, 2)     # (H, Nq, dk)
    k = (x_kv @ wk.T + bk).reshape(n_kv, num_heads, d_k).transpose(1, 0, 2)   # (H, Nkv, dk)
    v = (x_kv @ wv.T + bv).reshape(n_kv, num_heads, d_k).transpose(1, 0, 2)   # (H, Nkv, dk)
    mask = batch_q[:, None] == batch_kv[None, :]
    s = jnp.einsum('hqd,hkd->hqk', q, k) / math.sqrt(d_k)
    s = jnp.where(mask[None], s, -jnp.inf)
    attn = jax.nn.softmax(s, axis=-1)
    o = jnp.einsum('hqk,hkd->hqd', attn, v).transpose(1, 0, 2).reshape(n_q, d_model)
    return o @ wo.T + bo, attn


if __name__ == "__main__":
    d_model = 32
    num_heads = 4
    n_q = 8
    n_kv = 8

    key = jax.random.PRNGKey(0)
    keys = jax.random.split(key, 10)

    x_q = jax.random.normal(keys[0], (n_q, d_model), dtype=jnp.float32)
    x_kv = jax.random.normal(keys[1], (n_kv, d_model), dtype=jnp.float32)
    # Segment / graph assignments; every query segment has at least one kv token.
    batch_q = jnp.array([0, 0, 0, 1, 1, 1, 2, 2], dtype=jnp.int32)
    batch_kv = jnp.array([0, 0, 1, 1, 1, 2, 2, 2], dtype=jnp.int32)

    sw = 0.1
    wq = jax.random.normal(keys[2], (d_model, d_model), jnp.float32) * sw
    bq = jax.random.normal(keys[3], (d_model,), jnp.float32) * sw
    wk = jax.random.normal(keys[4], (d_model, d_model), jnp.float32) * sw
    bk = jax.random.normal(keys[5], (d_model,), jnp.float32) * sw
    wv = jax.random.normal(keys[6], (d_model, d_model), jnp.float32) * sw
    bv = jax.random.normal(keys[7], (d_model,), jnp.float32) * sw
    wo = jax.random.normal(keys[8], (d_model, d_model), jnp.float32) * sw
    bo = jax.random.normal(keys[9], (d_model,), jnp.float32) * sw

    out, attn = multi_head_attention(x_q, x_kv, batch_q, batch_kv,
                                     wq, bq, wk, bk, wv, bv, wo, bo, num_heads)
    out = jax.block_until_ready(out)
    attn = jax.block_until_ready(attn)

    ref_out, ref_attn = reference(x_q, x_kv, batch_q, batch_kv,
                                  wq, bq, wk, bk, wv, bv, wo, bo, num_heads)

    assert out.shape == (n_q, d_model)
    assert attn.shape == (1, num_heads, n_q, n_kv)
    assert jnp.allclose(out, ref_out, atol=1e-5, rtol=1e-5), "output mismatch vs reference"
    assert jnp.allclose(attn[0], ref_attn, atol=1e-5, rtol=1e-5), "attn mismatch vs reference"

    print("KERNEL_OK")
</pallas_src>

<mosaic_0001>
module attributes {stable_mosaic.version = 11 : i64} {
  func.func @kv_proj_kernel(%arg0: i32, %arg1: memref<8x32xf32, #tpu.memory_space<vmem>>, %arg2: memref<32x32xf32, #tpu.memory_space<vmem>>, %arg3: memref<1x32xf32, #tpu.memory_space<vmem>>, %arg4: memref<32x32xf32, #tpu.memory_space<vmem>>, %arg5: memref<1x32xf32, #tpu.memory_space<vmem>>, %arg6: memref<8x32xf32, #tpu.memory_space<vmem>>, %arg7: memref<8x32xf32, #tpu.memory_space<vmem>>) attributes {dimension_semantics = [#tpu.dimension_semantics<parallel>], iteration_bounds = array<i64: 1>, scalar_prefetch = 0 : i64, scratch_operands = 0 : i64, tpu.core_type = #tpu.core_type<tc>, window_params = [{transform_indices = @transform_0, window_bounds = array<i64: 8, 32>}, {pipeline_mode = #tpu.pipeline_mode<synchronous>, transform_indices = @transform_1, window_bounds = array<i64: 32, 32>}, {pipeline_mode = #tpu.pipeline_mode<synchronous>, transform_indices = @transform_2, window_bounds = array<i64: 1, 32>}, {pipeline_mode = #tpu.pipeline_mode<synchronous>, transform_indices = @transform_3, window_bounds = array<i64: 32, 32>}, {pipeline_mode = #tpu.pipeline_mode<synchronous>, transform_indices = @transform_4, window_bounds = array<i64: 1, 32>}, {transform_indices = @transform_5, window_bounds = array<i64: 8, 32>}, {transform_indices = @transform_6, window_bounds = array<i64: 8, 32>}]} {
    %c0 = arith.constant 0 : index
    %c0_0 = arith.constant 0 : index
    %0 = vector.load %arg1[%c0, %c0_0] : memref<8x32xf32, #tpu.memory_space<vmem>>, vector<8x32xf32>
    %c0_1 = arith.constant 0 : index
    %c0_2 = arith.constant 0 : index
    %1 = vector.load %arg2[%c0_1, %c0_2] : memref<32x32xf32, #tpu.memory_space<vmem>>, vector<32x32xf32>
    %cst = arith.constant dense<0.000000e+00> : vector<8x32xf32>
    %2 = tpu.matmul %0, %1, %cst {dimension_numbers = #tpu.dot_dimension_numbers<[1], [0], [0], [1], [0, 0, 1, 1], [], []>} : vector<8x32xf32>, vector<32x32xf32>, vector<8x32xf32> -> vector<8x32xf32>
    %c0_3 = arith.constant 0 : index
    %c0_4 = arith.constant 0 : index
    %3 = vector.load %arg3[%c0_3, %c0_4] : memref<1x32xf32, #tpu.memory_space<vmem>>, vector<1x32xf32>
    %4 = vector.broadcast %3 : vector<1x32xf32> to vector<8x32xf32>
    %5 = arith.addf %2, %4 : vector<8x32xf32>
    %c0_5 = arith.constant 0 : index
    %c0_6 = arith.constant 0 : index
    %6 = vector.load %arg6[%c0_5, %c0_6] : memref<8x32xf32, #tpu.memory_space<vmem>>, vector<8x32xf32>
    tpu.vector_store %arg6[%c0_5, %c0_6], %5 {strides = array<i32>} : memref<8x32xf32, #tpu.memory_space<vmem>>, vector<8x32xf32>,
    %c0_7 = arith.constant 0 : index
    %c0_8 = arith.constant 0 : index
    %7 = vector.load %arg4[%c0_7, %c0_8] : memref<32x32xf32, #tpu.memory_space<vmem>>, vector<32x32xf32>
    %cst_9 = arith.constant dense<0.000000e+00> : vector<8x32xf32>
    %8 = tpu.matmul %0, %7, %cst_9 {dimension_numbers = #tpu.dot_dimension_numbers<[1], [0], [0], [1], [0, 0, 1, 1], [], []>} : vector<8x32xf32>, vector<32x32xf32>, vector<8x32xf32> -> vector<8x32xf32>
    %c0_10 = arith.constant 0 : index
    %c0_11 = arith.constant 0 : index
    %9 = vector.load %arg5[%c0_10, %c0_11] : memref<1x32xf32, #tpu.memory_space<vmem>>, vector<1x32xf32>
    %10 = vector.broadcast %9 : vector<1x32xf32> to vector<8x32xf32>
    %11 = arith.addf %8, %10 : vector<8x32xf32>
    %c0_12 = arith.constant 0 : index
    %c0_13 = arith.constant 0 : index
    %12 = vector.load %arg7[%c0_12, %c0_13] : memref<8x32xf32, #tpu.memory_space<vmem>>, vector<8x32xf32>
    tpu.vector_store %arg7[%c0_12, %c0_13], %11 {strides = array<i32>} : memref<8x32xf32, #tpu.memory_space<vmem>>, vector<8x32xf32>,
    return
  }
  func.func @transform_0(%arg0: i32) -> (i32, i32) {
    %c0_i32 = arith.constant 0 : i32
    %c0_i32_0 = arith.constant 0 : i32
    return %arg0, %c0_i32 : i32, i32
  }
  func.func @transform_1(%arg0: i32) -> (i32, i32) {
    %c0_i32 = arith.constant 0 : i32
    %c0_i32_0 = arith.constant 0 : i32
    %c0_i32_1 = arith.constant 0 : i32
    return %c0_i32, %c0_i32_0 : i32, i32
  }
  func.func @transform_2(%arg0: i32) -> (i32, i32) {
    %c0_i32 = arith.constant 0 : i32
    %c0_i32_0 = arith.constant 0 : i32
    %c0_i32_1 = arith.constant 0 : i32
    return %c0_i32, %c0_i32_0 : i32, i32
  }
  func.func @transform_3(%arg0: i32) -> (i32, i32) {
    %c0_i32 = arith.constant 0 : i32
    %c0_i32_0 = arith.constant 0 : i32
    %c0_i32_1 = arith.constant 0 : i32
    return %c0_i32, %c0_i32_0 : i32, i32
  }
  func.func @transform_4(%arg0: i32) -> (i32, i32) {
    %c0_i32 = arith.constant 0 : i32
    %c0_i32_0 = arith.constant 0 : i32
    %c0_i32_1 = arith.constant 0 : i32
    return %c0_i32, %c0_i32_0 : i32, i32
  }
  func.func @transform_5(%arg0: i32) -> (i32, i32) {
    %c0_i32 = arith.constant 0 : i32
    %c0_i32_0 = arith.constant 0 : i32
    return %arg0, %c0_i32 : i32, i32
  }
  func.func @transform_6(%arg0: i32) -> (i32, i32) {
    %c0_i32 = arith.constant 0 : i32
    %c0_i32_0 = arith.constant 0 : i32
    return %arg0, %c0_i32 : i32, i32
  }
}

</mosaic_0001>

<llo_original>
// kernel: tpu_custom_call.1
$region0: #{tpu_custom_call.1}
  #allocation0 [shape = 'u32[]', space=smem, size = 0x4, offset = 0x4, fixed_abs, tag = 'smem constant byte address 0x4 - core index']
  #allocation1 [shape = 'u32[144,128]{1,0:T(1,128)}', space=vmem, size = 0x12000, scoped, tag = 'internal scratch']
  %s0 = inlined_call_operand.hbm [shape: f32[8,32], index: 0, kind: input, shape index: {}]
  %s1 = inlined_call_operand.hbm [shape: f32[32,32], index: 1, kind: input, shape index: {}]
  %s2 = inlined_call_operand.hbm [shape: f32[1,32], index: 2, kind: input, shape index: {}]
  %s3 = inlined_call_operand.hbm [shape: f32[32,32], index: 3, kind: input, shape index: {}]
  %s4 = inlined_call_operand.hbm [shape: f32[1,32], index: 4, kind: input, shape index: {}]
  %s5 = inlined_call_operand.hbm [shape: f32[8,32], index: 5, kind: output, shape index: {0}]
  %s6 = inlined_call_operand.hbm [shape: f32[8,32], index: 6, kind: output, shape index: {1}]
  %7 = xla_tuple %s5, %s6
  %s8 = sld [smem:[#allocation0]]
  $region58: #{tpu_custom_call.1} parent=0
    _
  %s10 = ssub.s32 1, %s8
  %s11 = scalar_select 0, %s10, %s8
  $region1: #{tpu_custom_call.1} parent=0
    #allocation2 [shape = 'u8[4096]{0}', space=vmem, size = 0x1000, scoped, tag = 'input window, operand 0, single buffered']
    #allocation3 [shape = 's32[1]{0}', space=sflag, size = 0x4, scoped, tag = 'scoped memory for tpu_custom_call.1']
    #allocation4 [shape = 's32[1]{0}', space=sflag, size = 0x4, scoped, tag = 'scoped memory for tpu_custom_call.1']
    #allocation5 [shape = 'u8[16384]{0}', space=vmem, size = 0x4000, scoped, tag = 'input window, operand 1, single buffered']
    #allocation6 [shape = 's32[1]{0}', space=sflag, size = 0x4, scoped, tag = 'scoped memory for tpu_custom_call.1']
    #allocation7 [shape = 'u8[512]{0}', space=vmem, size = 0x400, scoped, tag = 'input window, operand 2, single buffered']
    #allocation8 [shape = 'u8[16384]{0}', space=vmem, size = 0x4000, scoped, tag = 'input window, operand 3, single buffered']
    #allocation9 [shape = 's32[1]{0}', space=sflag, size = 0x4, scoped, tag = 'scoped memory for tpu_custom_call.1']
    #allocation10 [shape = 'u8[512]{0}', space=vmem, size = 0x400, scoped, tag = 'input window, operand 4, single buffered']
    #allocation11 [shape = 'u8[4096]{0}', space=vmem, size = 0x1000, scoped, tag = 'output window, operand 0, single buffered']
    #allocation12 [shape = 'u8[4096]{0}', space=vmem, size = 0x1000, scoped, tag = 'output window, operand 1, single buffered']
    #allocation13 [shape = 's32[1]{0}', space=sflag, size = 0x4, scoped, tag = 'scoped memory for tpu_custom_call.1']
    %12 = vsyncpa [#allocation3], 0
    %13 = vsyncpa [#allocation6], 0
    %14 = vsyncpa [#allocation9], 0
    %15 = vsyncpa [#allocation4], 0
    %16 = vsyncpa [#allocation13], 0
    // Predicated region
    $region2: #{tpu_custom_call.1} parent=1 // pred_check
      _
    $region3: #{tpu_custom_call.1} parent=1 // pred_check_branch
      %18 = sbr.rel (0) target = $region5
    $region4: #{tpu_custom_call.1} parent=1 // pred_region
      %s20 = ssub.s32 128, 128
      %21 = vsyncadd [#allocation3], %s20
      %s23 = sshll.u32 [#allocation2], 4
      %s24 = int_to_ptr.vmem [resolvable:$true] %s23
      %26 = dma.hbm_to_vmem [thread:$0]  %s0, 128, %s24, [#allocation3]
    $region5: #{tpu_custom_call.1} parent=1 // pred_fallthru
      _
    // Predicated region
    $region6: #{tpu_custom_call.1} parent=1 // pred_check
      _
    $region7: #{tpu_custom_call.1} parent=1 // pred_check_branch
      %28 = sbr.rel (0) target = $region9
    $region8: #{tpu_custom_call.1} parent=1 // pred_region
      %s30 = ssub.s32 512, 512
      %31 = vsyncadd [#allocation6], %s30
      %s32 = sshll.u32 [#allocation5], 4
      %s33 = int_to_ptr.vmem [resolvable:$true] %s32
      %38 = dma.hbm_to_vmem [thread:$0]  %s1, 512, %s33, [#allocation6], 128, 128, 8
    $region9: #{tpu_custom_call.1} parent=1 // pred_fallthru
      _
    // Predicated region
    $region10: #{tpu_custom_call.1} parent=1 // pred_check
      _
    $region11: #{tpu_custom_call.1} parent=1 // pred_check_branch
      %40 = sbr.rel (0) target = $region13
    $region12: #{tpu_custom_call.1} parent=1 // pred_region
      %s42 = ssub.s32 16, 16
      %43 = vsyncadd [#allocation6], %s42
      %s45 = sshll.u32 [#allocation7], 4
      %s46 = int_to_ptr.vmem [resolvable:$true] %s45
      %48 = dma.hbm_to_vmem [thread:$0]  %s2, 16, %s46, [#allocation6]
    $region13: #{tpu_custom_call.1} parent=1 // pred_fallthru
      _
    // Predicated region
    $region14: #{tpu_custom_call.1} parent=1 // pred_check
      _
    $region15: #{tpu_custom_call.1} parent=1 // pred_check_branch
      %50 = sbr.rel (0) target = $region17
    $region16: #{tpu_custom_call.1} parent=1 // pred_region
      %s52 = ssub.s32 512, 512
      %53 = vsyncadd [#allocation9], %s52
      %s54 = sshll.u32 [#allocation8], 4
      %s55 = int_to_ptr.vmem [resolvable:$true] %s54
      %60 = dma.hbm_to_vmem [thread:$0]  %s3, 512, %s55, [#allocation9], 128, 128, 8
    $region17: #{tpu_custom_call.1} parent=1 // pred_fallthru
      _
    // Predicated region
    $region18: #{tpu_custom_call.1} parent=1 // pred_check
      _
    $region19: #{tpu_custom_call.1} parent=1 // pred_check_branch
      %62 = sbr.rel (0) target = $region21
    $region20: #{tpu_custom_call.1} parent=1 // pred_region
      %s64 = ssub.s32 16, 16
      %65 = vsyncadd [#allocation9], %s64
      %s67 = sshll.u32 [#allocation10], 4
      %s68 = int_to_ptr.vmem [resolvable:$true] %s67
      %70 = dma.hbm_to_vmem [thread:$0]  %s4, 16, %s68, [#allocation9]
    $region21: #{tpu_custom_call.1} parent=1 // pred_fallthru
      _
    // Predicated region
    $region22: #{tpu_custom_call.1} parent=1 // pred_check
      _
    $region23: #{tpu_custom_call.1} parent=1 // pred_check_branch
      %72 = sbr.rel (0) target = $region25
    $region24: #{tpu_custom_call.1} parent=1 // pred_region
      %73 = dma.done [#allocation3], 128
    $region25: #{tpu_custom_call.1} parent=1 // pred_fallthru
      _
    // Predicated region
    $region26: #{tpu_custom_call.1} parent=1 // pred_check
      _
    $region27: #{tpu_custom_call.1} parent=1 // pred_check_branch
      %75 = sbr.rel (0) target = $region29
    $region28: #{tpu_custom_call.1} parent=1 // pred_region
      %76 = dma.done [#allocation6], 512
    $region29: #{tpu_custom_call.1} parent=1 // pred_fallthru
      _
    // Predicated region
    $region30: #{tpu_custom_call.1} parent=1 // pred_check
      _
    $region31: #{tpu_custom_call.1} parent=1 // pred_check_branch
      %78 = sbr.rel (0) target = $region33
    $region32: #{tpu_custom_call.1} parent=1 // pred_region
      %79 = dma.done [#allocation6], 16
    $region33: #{tpu_custom_call.1} parent=1 // pred_fallthru
      _
    // Predicated region
    $region34: #{tpu_custom_call.1} parent=1 // pred_check
      _
    $region35: #{tpu_custom_call.1} parent=1 // pred_check_branch
      %81 = sbr.rel (0) target = $region37
    $region36: #{tpu_custom_call.1} parent=1 // pred_region
      %82 = dma.done [#allocation9], 512
    $region37: #{tpu_custom_call.1} parent=1 // pred_fallthru
      _
    // Predicated region
    $region38: #{tpu_custom_call.1} parent=1 // pred_check
      _
    $region39: #{tpu_custom_call.1} parent=1 // pred_check_branch
      %84 = sbr.rel (0) target = $region41
    $region40: #{tpu_custom_call.1} parent=1 // pred_region
      %85 = dma.done [#allocation9], 16
    $region41: #{tpu_custom_call.1} parent=1 // pred_fallthru
      _
    %v86 = vld [vmem:[#allocation2] sm:$0xff]
    %v87 = vld [vmem:[#allocation5] sm:$0xff]
    %v88 = vld [vmem:[#allocation5 + $0x8] sm:$0xff]
    %v89 = vld [vmem:[#allocation5 + $0x10] sm:$0xff]
    %v90 = vld [vmem:[#allocation5 + $0x18] sm:$0xff]
    %v91 = vld [vmem:[#allocation7] sm:$0x1]
    %v93 = vlaneseq
    %v94 = vshrl.u32 %v93, 7
    %v95 = vsub.s32 0, %v94
    %v96 = vrot.slane %v91, %v95
    %vm98 = vcmask 261120
    %v100 = vsel %vm98, %v86, 0
    %102 = vmatprep.subr.mxu0 0.0
    %103 = vmatpush1.msra.mxu0 %v87
    %104 = vmatprep.subr.mxu0 0.0
    %105 = vmatpush1.msra.mxu0 %v88
    %106 = vmatprep.subr.mxu0 0.0
    %107 = vmatpush1.msra.mxu0 %v89
    %108 = vmatprep.subr.mxu0 0.0
    %109 = vmatpush1.msra.mxu0 %v90
    %110 = vmatprep.subr.mxu0 0.0
    %111 = vmatpush1.msra.mxu0 0.0
    %112 = vmatprep.subr.mxu0 0.0
    %113 = vmatpush1.msra.mxu0 0.0
    %114 = vmatprep.subr.mxu0 0.0
    %115 = vmatpush1.msra.mxu0 0.0
    %116 = vmatprep.subr.mxu0 0.0
    %117 = vmatpush1.msra.mxu0 0.0
    %118 = vmatprep.subr.mxu0 0.0
    %119 = vmatpush1.msra.mxu0 0.0
    %120 = vmatprep.subr.mxu0 0.0
    %121 = vmatpush1.msra.mxu0 0.0
    %122 = vmatprep.subr.mxu0 0.0
    %123 = vmatpush1.msra.mxu0 0.0
    %124 = vmatprep.subr.mxu0 0.0
    %125 = vmatpush1.msra.mxu0 0.0
    %126 = vmatprep.subr.mxu0 0.0
    %127 = vmatpush1.msra.mxu0 0.0
    %128 = vmatprep.subr.mxu0 0.0
    %129 = vmatpush1.msra.mxu0 0.0
    %130 = vmatprep.subr.mxu0 0.0
    %131 = vmatpush1.msra.mxu0 0.0
    %132 = vmatprep.subr.mxu0 0.0
    %133 = vmatpush1.msra.mxu0 0.0
    %134 = vmatprep.subr.mxu0 0.0
    %135 = vmatpush1.msra.mxu0 0.0
    %136 = vmatprep.subr.mxu0 0.0
    %137 = vmatpush1.msra.mxu0 0.0
    %138 = vmatprep.subr.mxu0 0.0
    %139 = vmatpush1.msra.mxu0 0.0
    %140 = vmatprep.subr.mxu0 0.0
    %141 = vmatpush1.msra.mxu0 0.0
    %142 = vmatprep.subr.mxu0 0.0
    %143 = vmatpush1.msra.mxu0 0.0
    %144 = vmatprep.subr.mxu0 0.0
    %145 = vmatpush1.msra.mxu0 0.0
    %146 = vmatprep.subr.mxu0 0.0
    %147 = vmatpush1.msra.mxu0 0.0
    %148 = vmatprep.subr.mxu0 0.0
    %149 = vmatpush1.msra.mxu0 0.0
    %150 = vmatprep.subr.mxu0 0.0
    %151 = vmatpush1.msra.mxu0 0.0
    %152 = vmatprep.subr.mxu0 0.0
    %153 = vmatpush1.msra.mxu0 0.0
    %154 = vmatprep.subr.mxu0 0.0
    %155 = vmatpush1.msra.mxu0 0.0
    %156 = vmatprep.subr.mxu0 0.0
    %157 = vmatpush1.msra.mxu0 0.0
    %158 = vmatprep.subr.mxu0 0.0
    %159 = vmatpush1.msra.mxu0 0.0
    %160 = vmatprep.subr.mxu0 0.0
    %161 = vmatpush1.msra.mxu0 0.0
    %162 = vmatprep.subr.mxu0 0.0
    %163 = vmatpush1.msra.mxu0 0.0
    %164 = vmatprep.subr.mxu0 0.0
    %165 = vmatpush1.msra.mxu0 0.0
    %166 = vmatprep.mubr.f32.mxu0 0.0
    %167 = vmatmul.mubr.f32.gmra.mrb[0].mxu0 %v100
    %v168 = vpop.f32.mrb[0].mxu0
    %v169 = vadd.f32 %v96, %v168
    %v170 = vpop.f32.mrb[0].mxu0
    %171 = vdwg.mxu0
    %172 = vst.msk [vmem:[#allocation11] sm:$0xff] %vm98, %v169
    %v173 = vld [vmem:[#allocation8] sm:$0xff]
    %v174 = vld [vmem:[#allocation8 + $0x8] sm:$0xff]
    %v175 = vld [vmem:[#allocation8 + $0x10] sm:$0xff]
    %v176 = vld [vmem:[#allocation8 + $0x18] sm:$0xff]
    %v177 = vld [vmem:[#allocation10] sm:$0x1]
    %v179 = vlaneseq
    %v180 = vshrl.u32 %v179, 7
    %v181 = vsub.s32 0, %v180
    %v182 = vrot.slane %v177, %v181
    %184 = vmatprep.subr.mxu0 0.0
    %185 = vmatpush1.msra.mxu0 %v173
    %186 = vmatprep.subr.mxu0 0.0
    %187 = vmatpush1.msra.mxu0 %v174
    %188 = vmatprep.subr.mxu0 0.0
    %189 = vmatpush1.msra.mxu0 %v175
    %190 = vmatprep.subr.mxu0 0.0
    %191 = vmatpush1.msra.mxu0 %v176
    %192 = vmatprep.subr.mxu0 0.0
    %193 = vmatpush1.msra.mxu0 0.0
    %194 = vmatprep.subr.mxu0 0.0
    %195 = vmatpush1.msra.mxu0 0.0
    %196 = vmatprep.subr.mxu0 0.0
    %197 = vmatpush1.msra.mxu0 0.0
    %198 = vmatprep.subr.mxu0 0.0
    %199 = vmatpush1.msra.mxu0 0.0
    %200 = vmatprep.subr.mxu0 0.0
    %201 = vmatpush1.msra.mxu0 0.0
    %202 = vmatprep.subr.mxu0 0.0
    %203 = vmatpush1.msra.mxu0 0.0
    %204 = vmatprep.subr.mxu0 0.0
    %205 = vmatpush1.msra.mxu0 0.0
    %206 = vmatprep.subr.mxu0 0.0
    %207 = vmatpush1.msra.mxu0 0.0
    %208 = vmatprep.subr.mxu0 0.0
    %209 = vmatpush1.msra.mxu0 0.0
    %210 = vmatprep.subr.mxu0 0.0
    %211 = vmatpush1.msra.mxu0 0.0
    %212 = vmatprep.subr.mxu0 0.0
    %213 = vmatpush1.msra.mxu0 0.0
    %214 = vmatprep.subr.mxu0 0.0
    %215 = vmatpush1.msra.mxu0 0.0
    %216 = vmatprep.subr.mxu0 0.0
    %217 = vmatpush1.msra.mxu0 0.0
    %218 = vmatprep.subr.mxu0 0.0
    %219 = vmatpush1.msra.mxu0 0.0
    %220 = vmatprep.subr.mxu0 0.0
    %221 = vmatpush1.msra.mxu0 0.0
    %222 = vmatprep.subr.mxu0 0.0
    %223 = vmatpush1.msra.mxu0 0.0
    %224 = vmatprep.subr.mxu0 0.0
    %225 = vmatpush1.msra.mxu0 0.0
    %226 = vmatprep.subr.mxu0 0.0
    %227 = vmatpush1.msra.mxu0 0.0
    %228 = vmatprep.subr.mxu0 0.0
    %229 = vmatpush1.msra.mxu0 0.0
    %230 = vmatprep.subr.mxu0 0.0
    %231 = vmatpush1.msra.mxu0 0.0
    %232 = vmatprep.subr.mxu0 0.0
    %233 = vmatpush1.msra.mxu0 0.0
    %234 = vmatprep.subr.mxu0 0.0
    %235 = vmatpush1.msra.mxu0 0.0
    %236 = vmatprep.subr.mxu0 0.0
    %237 = vmatpush1.msra.mxu0 0.0
    %238 = vmatprep.subr.mxu0 0.0
    %239 = vmatpush1.msra.mxu0 0.0
    %240 = vmatprep.subr.mxu0 0.0
    %241 = vmatpush1.msra.mxu0 0.0
    %242 = vmatprep.subr.mxu0 0.0
    %243 = vmatpush1.msra.mxu0 0.0
    %244 = vmatprep.subr.mxu0 0.0
    %245 = vmatpush1.msra.mxu0 0.0
    %246 = vmatprep.subr.mxu0 0.0
    %247 = vmatpush1.msra.mxu0 0.0
    %248 = vmatprep.mubr.f32.mxu0 0.0
    %249 = vmatmul.mubr.f32.gmra.mrb[0].mxu0 %v100
    %v250 = vpop.f32.mrb[0].mxu0
    %v251 = vadd.f32 %v182, %v250
    %v252 = vpop.f32.mrb[0].mxu0
    %253 = vdwg.mxu0
    %254 = vst.msk [vmem:[#allocation12] sm:$0xff] %vm98, %v251
    // Predicated region
    $region42: #{tpu_custom_call.1} parent=1 // pred_check
      _
    $region43: #{tpu_custom_call.1} parent=1 // pred_check_branch
      %256 = sbr.rel (0) target = $region45
    $region44: #{tpu_custom_call.1} parent=1 // pred_region
      %s258 = ssub.s32 128, 128
      %259 = vsyncadd [#allocation4], %s258
      %s261 = sshll.u32 [#allocation11], 4
      %s262 = int_to_ptr.vmem [resolvable:$true] %s261
      %264 = dma.vmem_to_hbm [thread:$0]  %s262, 128, %s5, [#allocation4]
    $region45: #{tpu_custom_call.1} parent=1 // pred_fallthru
      _
    // Predicated region
    $region46: #{tpu_custom_call.1} parent=1 // pred_check
      _
    $region47: #{tpu_custom_call.1} parent=1 // pred_check_branch
      %266 = sbr.rel (0) target = $region49
    $region48: #{tpu_custom_call.1} parent=1 // pred_region
      %s268 = ssub.s32 128, 128
      %269 = vsyncadd [#allocation13], %s268
      %s271 = sshll.u32 [#allocation12], 4
      %s272 = int_to_ptr.vmem [resolvable:$true] %s271
      %274 = dma.vmem_to_hbm [thread:$0]  %s272, 128, %s6, [#allocation13]
    $region49: #{tpu_custom_call.1} parent=1 // pred_fallthru
      _
    // Predicated region
    $region50: #{tpu_custom_call.1} parent=1 // pred_check
      _
    $region51: #{tpu_custom_call.1} parent=1 // pred_check_branch
      %276 = sbr.rel (0) target = $region53
    $region52: #{tpu_custom_call.1} parent=1 // pred_region
      %277 = dma.done [#allocation4], 128
    $region53: #{tpu_custom_call.1} parent=1 // pred_fallthru
      _
    // Predicated region
    $region54: #{tpu_custom_call.1} parent=1 // pred_check
      _
    $region55: #{tpu_custom_call.1} parent=1 // pred_check_branch
      %279 = sbr.rel (0) target = $region57
    $region56: #{tpu_custom_call.1} parent=1 // pred_region
      %280 = dma.done [#allocation13], 128
    $region57: #{tpu_custom_call.1} parent=1 // pred_fallthru
      _
    %281 = vsyncpa [#allocation3], 1
    %282 = vsyncpa [#allocation6], 1
    %283 = vsyncpa [#allocation9], 1
    %284 = vsyncpa [#allocation4], 1
    %285 = vsyncpa [#allocation13], 1

</llo_original>
